<compile_context>
chip_gen: v5e
topology: v5e:2x2
jax: 0.10.0
libtpu: 0.0.40
codegen_flags: <defaults>
</compile_context>

<pallas_src>
import jax
import jax.numpy as jnp
from jax import lax
from jax.experimental import pallas as pl
from jax.experimental.pallas import tpu as pltpu


OUT_P = 128          # lane-dense padded output width (unmasked stores)
EVAL_MAX_STEPS = 201  # PyTorch eval loop: i = 0..200 inclusive -> <= 201 outputs


# ----------------------------------------------------------------------------
# Parameter prep (hoisted out of the per-call path; run once per checkpoint).
# ----------------------------------------------------------------------------
def prepare_decoder_params(w_ih, w_hh, b_ih, b_hh, w_lin, b_lin):
    H = w_hh.shape[1]
    I = w_ih.shape[1]
    OUT = w_lin.shape[0]
    assert w_ih.shape == (4 * H, I)
    assert w_hh.shape == (4 * H, H)
    assert w_lin.shape == (OUT, H)

    f32 = jnp.float32
    wih_t = w_ih.T.astype(f32)                               # (I, 4H)
    whh_t = w_hh.T.astype(f32)                               # (H, 4H)
    b = (b_ih + b_hh).astype(f32).reshape(1, 4 * H)          # fused LSTM bias

    # Fold tanh into the single sigmoid pass: tanh(x) = 2*sigmoid(2x) - 1, so
    # pre-scale head weights/bias for the tanh columns (0,1) by 2 at prep time.
    col_scale = jnp.where(jnp.arange(OUT) < 2, 2.0, 1.0).astype(f32)
    wlin_scaled = w_lin.astype(f32) * col_scale[:, None]     # (OUT, H)
    blin_scaled = b_lin.astype(f32) * col_scale              # (OUT,)

    wlin_t_p = jnp.zeros((H, OUT_P), f32).at[:, :OUT].set(wlin_scaled.T)
    blin_p = jnp.zeros((1, OUT_P), f32).at[:, :OUT].set(blin_scaled)

    return dict(wih_t=wih_t, whh_t=whh_t, b=b,
                wlin_t_p=wlin_t_p, blin_p=blin_p,
                H=H, I=I, OUT=OUT)


# ----------------------------------------------------------------------------
# Train mode: whole (T, B) forward as one gridless kernel invocation.
# ----------------------------------------------------------------------------
def decoder_lstm_train_kernel(x_ref, wih_t_ref, whh_t_ref, b_ref, h0_ref,
                              c0_ref, wlin_t_ref, blin_ref, out_ref, gates_sc):
    H = whh_t_ref.shape[0]
    Bp = h0_ref.shape[0]
    T = x_ref.shape[0] // Bp

    # ---- Pass 1: hoisted input projection for all timesteps (one matmul). ----
    gates_sc[...] = (
        jnp.dot(x_ref[...], wih_t_ref[...], preferred_element_type=jnp.float32)
        + b_ref[...]
    )

    whh_t = whh_t_ref[...]  # loop-invariant recurrent weight kept as a value

    # ---- Pass 2: serial recurrence (unrolled in-kernel loop over T). --------
    def step(t, carry):
        h, c = carry
        row = pl.multiple_of(t * Bp, Bp)
        gates = gates_sc[pl.ds(row, Bp), :] + jnp.dot(
            h, whh_t, preferred_element_type=jnp.float32)

        # Two full-width transcendental passes instead of four narrow slices.
        sig = jax.nn.sigmoid(gates)
        tnh = jnp.tanh(gates)
        i_g = sig[:, 0 * H:1 * H]
        f_g = sig[:, 1 * H:2 * H]
        g_g = tnh[:, 2 * H:3 * H]
        o_g = sig[:, 3 * H:4 * H]

        c_new = f_g * c + i_g * g_g
        h_new = o_g * jnp.tanh(c_new)
        # Recycle the already-consumed i-gate lanes of this row block as the
        # h_t store (no separate hs scratch slab).
        gates_sc[pl.ds(row, Bp), :H] = h_new
        return h_new, c_new

    lax.fori_loop(0, T, step, (h0_ref[...], c0_ref[...]), unroll=True)

    # ---- Pass 3: hoisted output projection, single sigmoid pass + fixup. ----
    logits = (
        jnp.dot(gates_sc[:, :H], wlin_t_ref[...],
                preferred_element_type=jnp.float32)
        + blin_ref[...]
    )
    sg = jax.nn.sigmoid(logits)
    col = lax.broadcasted_iota(jnp.int32, sg.shape, 1)
    # cols 0,1 were pre-scaled by 2 -> 2*sigmoid-1 == tanh; cols >=2 -> sigmoid.
    out_ref[...] = jnp.where(col < 2, 2.0 * sg - 1.0, sg)


def decoder_rnn_forward(params, x, h0, c0):
    """'train'-mode forward of DecoderRNNmodel.  Returns (T*B, 4)."""
    T, B, I = x.shape
    H, OUT = params["H"], params["OUT"]
    Bp = max(8, ((B + 7) // 8) * 8)      # pad batch to a sublane multiple
    f32 = jnp.float32

    # Only activation/state padding remains per call (params prepped once).
    x2d = (jnp.zeros((T, Bp, I), f32).at[:, :B, :].set(x.astype(f32))
           .reshape(T * Bp, I))
    h0_p = jnp.zeros((Bp, H), f32).at[:B, :].set(h0[0].astype(f32))
    c0_p = jnp.zeros((Bp, H), f32).at[:B, :].set(c0[0].astype(f32))

    out_padded = pl.pallas_call(
        decoder_lstm_train_kernel,
        out_shape=jax.ShapeDtypeStruct((T * Bp, OUT_P), f32),
        scratch_shapes=[
            pltpu.VMEM((T * Bp, 4 * H), f32),   # gate slab (also stores h_t)
        ],
        compiler_params=pltpu.CompilerParams(vmem_limit_bytes=32 * 1024 * 1024),
    )(x2d, params["wih_t"], params["whh_t"], params["b"], h0_p, c0_p,
      params["wlin_t_p"], params["blin_p"])

    # Undo padding: (T*Bp, 128) -> (T, B, 4) -> (T*B, 4)  (matches .view()).
    return out_padded.reshape(T, Bp, OUT_P)[:, :B, :OUT].reshape(T * B, OUT)


# ----------------------------------------------------------------------------
# Eval mode: autoregressive generation as ONE kernel launch (26 x 8 steps).
# The stop condition never changes the trajectory (cols 2,3 of the fed-back
# output are zeroed before each step), so the kernel computes the capped
# 201-step trajectory and the wrapper applies the stop/cap truncation.
# ----------------------------------------------------------------------------
def decoder_lstm_eval_kernel(x0_ref, wih_t_ref, whh_t_ref, b_ref, h0_ref,
                             c0_ref, wlin_t_ref, blin_ref, out_ref,
                             x_sc, h_sc, c_sc):
    H = whh_t_ref.shape[0]
    I = wih_t_ref.shape[0]
    steps_per_block = out_ref.shape[0]
    out_p = out_ref.shape[1]

    @pl.when(pl.program_id(0) == 0)
    def _():
        x_sc[...] = x0_ref[...]
        h_sc[...] = h0_ref[...]
        c_sc[...] = c0_ref[...]

    wih_t = wih_t_ref[...]
    whh_t = whh_t_ref[...]
    b = b_ref[...]
    wlin_t = wlin_t_ref[...]
    blin = blin_ref[...]

    in_col = lax.broadcasted_iota(jnp.int32, (1, I), 1)
    out_col = lax.broadcasted_iota(jnp.int32, (1, out_p), 1)

    x = x_sc[...]
    h = h_sc[...]
    c = c_sc[...]
    rows = []
    for _ in range(steps_per_block):          # 8 static recurrent steps / block
        xin = jnp.where(in_col < 2, x[:, :I], 0.0)   # zero cols 2,3 of the input
        gates = (jnp.dot(xin, wih_t, preferred_element_type=jnp.float32) + b
                 + jnp.dot(h, whh_t, preferred_element_type=jnp.float32))
        sig = jax.nn.sigmoid(gates)
        tnh = jnp.tanh(gates)
        i_g = sig[:, 0 * H:1 * H]
        f_g = sig[:, 1 * H:2 * H]
        g_g = tnh[:, 2 * H:3 * H]
        o_g = sig[:, 3 * H:4 * H]
        c = f_g * c + i_g * g_g
        h = o_g * jnp.tanh(c)

        logits = jnp.dot(h, wlin_t, preferred_element_type=jnp.float32) + blin
        sg = jax.nn.sigmoid(logits)           # cols 0,1 pre-scaled -> tanh fold
        out_row = jnp.where(out_col < 2, 2.0 * sg - 1.0, sg)
        rows.append(out_row)
        x = out_row                           # fed back as next input

    out_ref[...] = jnp.concatenate(rows, axis=0)   # one (8, 128) dense store
    x_sc[...] = x
    h_sc[...] = h
    c_sc[...] = c


def decoder_rnn_generate(params, x0, h0_2d, c0_2d):
    """'eval'-mode forward.  x0: (4,), h0_2d/c0_2d: (1, H).

    Returns (trajectory (201, 4), count) where trajectory[:count] equals
    torch.cat(outputs) of the PyTorch while-loop (count == 0 iff x0[3] > 0.5).
    """
    H, I, OUT = params["H"], params["I"], params["OUT"]
    f32 = jnp.float32
    steps_per_block = 8
    n_blocks = pl.cdiv(EVAL_MAX_STEPS, steps_per_block)      # 26
    R = n_blocks * steps_per_block                           # 208

    x0_flat = x0.astype(f32).reshape(-1)
    x0_p = jnp.zeros((1, OUT_P), f32).at[0, :I].set(x0_flat[:I])
    h0_p = h0_2d.astype(f32).reshape(1, H)
    c0_p = c0_2d.astype(f32).reshape(1, H)

    out_padded = pl.pallas_call(
        decoder_lstm_eval_kernel,
        grid=(n_blocks,),
        in_specs=[
            pl.BlockSpec((1, OUT_P), lambda s: (0, 0)),      # x0
            pl.BlockSpec((I, 4 * H), lambda s: (0, 0)),      # W_ih^T
            pl.BlockSpec((H, 4 * H), lambda s: (0, 0)),      # W_hh^T
            pl.BlockSpec((1, 4 * H), lambda s: (0, 0)),      # fused bias
            pl.BlockSpec((1, H), lambda s: (0, 0)),          # h0
            pl.BlockSpec((1, H), lambda s: (0, 0)),          # c0
            pl.BlockSpec((H, OUT_P), lambda s: (0, 0)),      # W_lin^T (scaled)
            pl.BlockSpec((1, OUT_P), lambda s: (0, 0)),      # b_lin (scaled)
        ],
        out_specs=pl.BlockSpec((steps_per_block, OUT_P), lambda s: (s, 0)),
        out_shape=jax.ShapeDtypeStruct((R, OUT_P), f32),
        scratch_shapes=[
            pltpu.VMEM((1, OUT_P), f32),     # fed-back output (next input)
            pltpu.VMEM((1, H), f32),         # h carry
            pltpu.VMEM((1, H), f32),         # c carry
        ],
        compiler_params=pltpu.CompilerParams(
            dimension_semantics=("arbitrary",),
            vmem_limit_bytes=32 * 1024 * 1024),
    )(x0_p, params["wih_t"], params["whh_t"], params["b"], h0_p, c0_p,
      params["wlin_t_p"], params["blin_p"])

    outs = out_padded[:EVAL_MAX_STEPS, :OUT]                 # (201, 4)

    # PyTorch while/break semantics: stop when the (fed-back) col-3 > 0.5,
    # hard cap at 201 outputs; zero outputs if the very first input stops it.
    hit = outs[:, 3] > 0.5
    count = jnp.where(jnp.any(hit), jnp.argmax(hit) + 1, EVAL_MAX_STEPS)
    count = jnp.where(x0_flat[3] > 0.5, 0, count)
    return outs, count
    # TODO(synk): an in-kernel lax.while_loop with an SMEM stop flag could
    # early-exit instead of always computing the capped 201-step trajectory.


# ----------------------------------------------------------------------------
# Pure-JAX references for correctness checking.
# ----------------------------------------------------------------------------
def decoder_reference(x, w_ih, w_hh, b_ih, b_hh, w_lin, b_lin, h0, c0):
    H = w_hh.shape[1]

    def step(carry, x_t):
        h, c = carry
        gates = x_t @ w_ih.T + b_ih + h @ w_hh.T + b_hh
        i = jax.nn.sigmoid(gates[:, 0 * H:1 * H])
        f = jax.nn.sigmoid(gates[:, 1 * H:2 * H])
        g = jnp.tanh(gates[:, 2 * H:3 * H])
        o = jax.nn.sigmoid(gates[:, 3 * H:4 * H])
        c = f * c + i * g
        h = o * jnp.tanh(c)
        return (h, c), h

    _, hs = lax.scan(step, (h0[0], c0[0]), x)       # (T, B, H)
    out = hs.reshape(-1, H) @ w_lin.T + b_lin       # (T*B, 4)
    return jnp.concatenate(
        [jnp.tanh(out[:, :2]), jax.nn.sigmoid(out[:, 2:])], axis=1)


def decoder_generate_reference(x0, w_ih, w_hh, b_ih, b_hh, w_lin, b_lin,
                               h0_2d, c0_2d):
    H = w_hh.shape[1]

    def step(carry, _):
        x, h, c = carry
        xin = x.at[:, 2:].set(0.0)
        gates = xin @ w_ih.T + b_ih + h @ w_hh.T + b_hh
        i = jax.nn.sigmoid(gates[:, 0 * H:1 * H])
        f = jax.nn.sigmoid(gates[:, 1 * H:2 * H])
        g = jnp.tanh(gates[:, 2 * H:3 * H])
        o = jax.nn.sigmoid(gates[:, 3 * H:4 * H])
        c = f * c + i * g
        h = o * jnp.tanh(c)
        out = h @ w_lin.T + b_lin
        out = jnp.concatenate(
            [jnp.tanh(out[:, :2]), jax.nn.sigmoid(out[:, 2:])], axis=1)
        return (out, h, c), out[0]

    _, outs = lax.scan(step, (x0.reshape(1, -1), h0_2d, c0_2d), None,
                       length=EVAL_MAX_STEPS)
    return outs                                      # (201, 4)


if __name__ == "__main__":
    # Shapes consistent with DecoderRNNmodel(input_size=4, hidden_size=32,
    # n_layers=1): input_tensor (T=8, B=2, I=4), hidden states (1, B, 32).
    T, B, I, H, OUT = 8, 2, 4, 32, 4

    key = jax.random.PRNGKey(0)
    ks = jax.random.split(key, 9)
    scale = 1.0 / jnp.sqrt(H)     # PyTorch nn.LSTM / nn.Linear init range

    x = jax.random.normal(ks[0], (T, B, I), dtype=jnp.float32)
    w_ih = jax.random.uniform(ks[1], (4 * H, I), jnp.float32, -scale, scale)
    w_hh = jax.random.uniform(ks[2], (4 * H, H), jnp.float32, -scale, scale)
    b_ih = jax.random.uniform(ks[3], (4 * H,), jnp.float32, -scale, scale)
    b_hh = jax.random.uniform(ks[4], (4 * H,), jnp.float32, -scale, scale)
    w_lin = jax.random.uniform(ks[5], (OUT, H), jnp.float32, -scale, scale)
    b_lin = jax.random.uniform(ks[6], (OUT,), jnp.float32, -scale, scale)
    h0 = jax.random.normal(ks[7], (1, B, H), dtype=jnp.float32)
    c0 = jax.random.normal(ks[8], (1, B, H), dtype=jnp.float32)

    # One-time parameter prep (hoisted out of the per-call path).
    params = prepare_decoder_params(w_ih, w_hh, b_ih, b_hh, w_lin, b_lin)

    # ---- train mode ----
    out = decoder_rnn_forward(params, x, h0, c0)
    jax.block_until_ready(out)
    out_ref = decoder_reference(x, w_ih, w_hh, b_ih, b_hh, w_lin, b_lin, h0, c0)
    assert out.shape == (T * B, OUT)
    assert jnp.allclose(out, out_ref, atol=2e-5, rtol=1e-5)

    # ---- eval mode (autoregressive generation, one kernel launch) ----
    x_eval = jnp.array([0.3, -0.5, 0.0, 0.0], dtype=jnp.float32)
    h0_eval = h0[0, :1, :]
    c0_eval = c0[0, :1, :]
    traj, count = decoder_rnn_generate(params, x_eval, h0_eval, c0_eval)
    jax.block_until_ready(traj)
    traj_ref = decoder_generate_reference(x_eval, w_ih, w_hh, b_ih, b_hh,
                                          w_lin, b_lin, h0_eval, c0_eval)
    assert traj.shape == (EVAL_MAX_STEPS, OUT)
    assert jnp.allclose(traj, traj_ref, atol=1e-3, rtol=1e-3)
    generated = traj[:int(count)]     # equals torch.cat(outputs) of eval mode
    assert generated.shape[1] == OUT

    print("KERNEL_OK")
</pallas_src>

<mosaic_0001>
module attributes {stable_mosaic.version = 11 : i64} {
  func.func @decoder_lstm_train_kernel(%arg0: memref<64x4xf32, #tpu.memory_space<vmem>>, %arg1: memref<4x128xf32, #tpu.memory_space<vmem>>, %arg2: memref<32x128xf32, #tpu.memory_space<vmem>>, %arg3: memref<1x128xf32, #tpu.memory_space<vmem>>, %arg4: memref<8x32xf32, #tpu.memory_space<vmem>>, %arg5: memref<8x32xf32, #tpu.memory_space<vmem>>, %arg6: memref<32x128xf32, #tpu.memory_space<vmem>>, %arg7: memref<1x128xf32, #tpu.memory_space<vmem>>, %arg8: memref<64x128xf32, #tpu.memory_space<vmem>>, %arg9: memref<64x128xf32, #tpu.memory_space<vmem>>) attributes {dimension_semantics = [], scalar_prefetch = 0 : i64, scratch_operands = 1 : i64, tpu.core_type = #tpu.core_type<tc>} {
    %c0 = arith.constant 0 : index
    %c0_0 = arith.constant 0 : index
    %0 = vector.load %arg0[%c0, %c0_0] : memref<64x4xf32, #tpu.memory_space<vmem>>, vector<64x4xf32>
    %c0_1 = arith.constant 0 : index
    %c0_2 = arith.constant 0 : index
    %1 = vector.load %arg1[%c0_1, %c0_2] : memref<4x128xf32, #tpu.memory_space<vmem>>, vector<4x128xf32>
    %cst = arith.constant dense<0.000000e+00> : vector<64x128xf32>
    %2 = tpu.matmul %0, %1, %cst {dimension_numbers = #tpu.dot_dimension_numbers<[1], [0], [0], [1], [0, 0, 1, 1], [], []>} : vector<64x4xf32>, vector<4x128xf32>, vector<64x128xf32> -> vector<64x128xf32>
    %c0_3 = arith.constant 0 : index
    %c0_4 = arith.constant 0 : index
    %3 = vector.load %arg3[%c0_3, %c0_4] : memref<1x128xf32, #tpu.memory_space<vmem>>, vector<1x128xf32>
    %4 = vector.broadcast %3 : vector<1x128xf32> to vector<64x128xf32>
    %5 = arith.addf %2, %4 : vector<64x128xf32>
    %c0_5 = arith.constant 0 : index
    %c0_6 = arith.constant 0 : index
    %6 = vector.load %arg9[%c0_5, %c0_6] : memref<64x128xf32, #tpu.memory_space<vmem>>, vector<64x128xf32>
    tpu.vector_store %arg9[%c0_5, %c0_6], %5 {strides = array<i32>} : memref<64x128xf32, #tpu.memory_space<vmem>>, vector<64x128xf32>,
    %c0_7 = arith.constant 0 : index
    %c0_8 = arith.constant 0 : index
    %7 = vector.load %arg2[%c0_7, %c0_8] : memref<32x128xf32, #tpu.memory_space<vmem>>, vector<32x128xf32>
    %c0_9 = arith.constant 0 : index
    %c0_10 = arith.constant 0 : index
    %8 = vector.load %arg4[%c0_9, %c0_10] : memref<8x32xf32, #tpu.memory_space<vmem>>, vector<8x32xf32>
    %c0_11 = arith.constant 0 : index
    %c0_12 = arith.constant 0 : index
    %9 = vector.load %arg5[%c0_11, %c0_12] : memref<8x32xf32, #tpu.memory_space<vmem>>, vector<8x32xf32>
    %c0_i32 = arith.constant 0 : i32
    %c8_i32 = arith.constant 8 : i32
    %10 = arith.muli %c0_i32, %c8_i32 : i32
    %11 = tpu.assume_multiple %10, 8 : i32
    %12 = arith.index_cast %11 : i32 to index
    %c0_13 = arith.constant 0 : index
    %13 = vector.load %arg9[%12, %c0_13] : memref<64x128xf32, #tpu.memory_space<vmem>>, vector<8x128xf32>
    %cst_14 = arith.constant dense<0.000000e+00> : vector<8x128xf32>
    %14 = tpu.matmul %8, %7, %cst_14 {dimension_numbers = #tpu.dot_dimension_numbers<[1], [0], [0], [1], [0, 0, 1, 1], [], []>} : vector<8x32xf32>, vector<32x128xf32>, vector<8x128xf32> -> vector<8x128xf32>
    %15 = arith.addf %13, %14 : vector<8x128xf32>
    %16 = arith.negf %15 : vector<8x128xf32>
    %17 = math.exp %16 : vector<8x128xf32>
    %cst_15 = arith.constant 1.000000e+00 : f32
    %18 = vector.broadcast %cst_15 : f32 to vector<8x128xf32>
    %19 = arith.addf %18, %17 : vector<8x128xf32>
    %20 = arith.divf %18, %19 : vector<8x128xf32>
    %21 = math.tanh %15 : vector<8x128xf32>
    %22 = vector.extract_strided_slice %20 {offsets = [0, 0], sizes = [8, 32], strides = [1, 1]} : vector<8x128xf32> to vector<8x32xf32>
    %23 = vector.extract_strided_slice %20 {offsets = [0, 32], sizes = [8, 32], strides = [1, 1]} : vector<8x128xf32> to vector<8x32xf32>
    %24 = vector.extract_strided_slice %21 {offsets = [0, 64], sizes = [8, 32], strides = [1, 1]} : vector<8x128xf32> to vector<8x32xf32>
    %25 = vector.extract_strided_slice %20 {offsets = [0, 96], sizes = [8, 32], strides = [1, 1]} : vector<8x128xf32> to vector<8x32xf32>
    %26 = arith.mulf %23, %9 : vector<8x32xf32>
    %27 = arith.mulf %22, %24 : vector<8x32xf32>
    %28 = arith.addf %26, %27 : vector<8x32xf32>
    %29 = math.tanh %28 : vector<8x32xf32>
    %30 = arith.mulf %25, %29 : vector<8x32xf32>
    %31 = arith.index_cast %11 : i32 to index
    %c0_16 = arith.constant 0 : index
    %32 = vector.load %arg9[%31, %c0_16] : memref<64x128xf32, #tpu.memory_space<vmem>>, vector<8x32xf32>
    tpu.vector_store %arg9[%31, %c0_16], %30 {strides = array<i32>} : memref<64x128xf32, #tpu.memory_space<vmem>>, vector<8x32xf32>,
    %c1_i32 = arith.constant 1 : i32
    %c8_i32_17 = arith.constant 8 : i32
    %33 = arith.muli %c1_i32, %c8_i32_17 : i32
    %34 = tpu.assume_multiple %33, 8 : i32
    %35 = arith.index_cast %34 : i32 to index
    %c0_18 = arith.constant 0 : index
    %36 = vector.load %arg9[%35, %c0_18] : memref<64x128xf32, #tpu.memory_space<vmem>>, vector<8x128xf32>
    %cst_19 = arith.constant dense<0.000000e+00> : vector<8x128xf32>
    %37 = tpu.matmul %30, %7, %cst_19 {dimension_numbers = #tpu.dot_dimension_numbers<[1], [0], [0], [1], [0, 0, 1, 1], [], []>} : vector<8x32xf32>, vector<32x128xf32>, vector<8x128xf32> -> vector<8x128xf32>
    %38 = arith.addf %36, %37 : vector<8x128xf32>
    %39 = arith.negf %38 : vector<8x128xf32>
    %40 = math.exp %39 : vector<8x128xf32>
    %cst_20 = arith.constant 1.000000e+00 : f32
    %41 = vector.broadcast %cst_20 : f32 to vector<8x128xf32>
    %42 = arith.addf %41, %40 : vector<8x128xf32>
    %43 = arith.divf %41, %42 : vector<8x128xf32>
    %44 = math.tanh %38 : vector<8x128xf32>
    %45 = vector.extract_strided_slice %43 {offsets = [0, 0], sizes = [8, 32], strides = [1, 1]} : vector<8x128xf32> to vector<8x32xf32>
    %46 = vector.extract_strided_slice %43 {offsets = [0, 32], sizes = [8, 32], strides = [1, 1]} : vector<8x128xf32> to vector<8x32xf32>
    %47 = vector.extract_strided_slice %44 {offsets = [0, 64], sizes = [8, 32], strides = [1, 1]} : vector<8x128xf32> to vector<8x32xf32>
    %48 = vector.extract_strided_slice %43 {offsets = [0, 96], sizes = [8, 32], strides = [1, 1]} : vector<8x128xf32> to vector<8x32xf32>
    %49 = arith.mulf %46, %28 : vector<8x32xf32>
    %50 = arith.mulf %45, %47 : vector<8x32xf32>
    %51 = arith.addf %49, %50 : vector<8x32xf32>
    %52 = math.tanh %51 : vector<8x32xf32>
    %53 = arith.mulf %48, %52 : vector<8x32xf32>
    %54 = arith.index_cast %34 : i32 to index
    %c0_21 = arith.constant 0 : index
    %55 = vector.load %arg9[%54, %c0_21] : memref<64x128xf32, #tpu.memory_space<vmem>>, vector<8x32xf32>
    tpu.vector_store %arg9[%54, %c0_21], %53 {strides = array<i32>} : memref<64x128xf32, #tpu.memory_space<vmem>>, vector<8x32xf32>,
    %c2_i32 = arith.constant 2 : i32
    %c8_i32_22 = arith.constant 8 : i32
    %56 = arith.muli %c2_i32, %c8_i32_22 : i32
    %57 = tpu.assume_multiple %56, 8 : i32
    %58 = arith.index_cast %57 : i32 to index
    %c0_23 = arith.constant 0 : index
    %59 = vector.load %arg9[%58, %c0_23] : memref<64x128xf32, #tpu.memory_space<vmem>>, vector<8x128xf32>
    %cst_24 = arith.constant dense<0.000000e+00> : vector<8x128xf32>
    %60 = tpu.matmul %53, %7, %cst_24 {dimension_numbers = #tpu.dot_dimension_numbers<[1], [0], [0], [1], [0, 0, 1, 1], [], []>} : vector<8x32xf32>, vector<32x128xf32>, vector<8x128xf32> -> vector<8x128xf32>
    %61 = arith.addf %59, %60 : vector<8x128xf32>
    %62 = arith.negf %61 : vector<8x128xf32>
    %63 = math.exp %62 : vector<8x128xf32>
    %cst_25 = arith.constant 1.000000e+00 : f32
    %64 = vector.broadcast %cst_25 : f32 to vector<8x128xf32>
    %65 = arith.addf %64, %63 : vector<8x128xf32>
    %66 = arith.divf %64, %65 : vector<8x128xf32>
    %67 = math.tanh %61 : vector<8x128xf32>
    %68 = vector.extract_strided_slice %66 {offsets = [0, 0], sizes = [8, 32], strides = [1, 1]} : vector<8x128xf32> to vector<8x32xf32>
    %69 = vector.extract_strided_slice %66 {offsets = [0, 32], sizes = [8, 32], strides = [1, 1]} : vector<8x128xf32> to vector<8x32xf32>
    %70 = vector.extract_strided_slice %67 {offsets = [0, 64], sizes = [8, 32], strides = [1, 1]} : vector<8x128xf32> to vector<8x32xf32>
    %71 = vector.extract_strided_slice %66 {offsets = [0, 96], sizes = [8, 32], strides = [1, 1]} : vector<8x128xf32> to vector<8x32xf32>
    %72 = arith.mulf %69, %51 : vector<8x32xf32>
    %73 = arith.mulf %68, %70 : vector<8x32xf32>
    %74 = arith.addf %72, %73 : vector<8x32xf32>
    %75 = math.tanh %74 : vector<8x32xf32>
    %76 = arith.mulf %71, %75 : vector<8x32xf32>
    %77 = arith.index_cast %57 : i32 to index
    %c0_26 = arith.constant 0 : index
    %78 = vector.load %arg9[%77, %c0_26] : memref<64x128xf32, #tpu.memory_space<vmem>>, vector<8x32xf32>
    tpu.vector_store %arg9[%77, %c0_26], %76 {strides = array<i32>} : memref<64x128xf32, #tpu.memory_space<vmem>>, vector<8x32xf32>,
    %c3_i32 = arith.constant 3 : i32
    %c8_i32_27 = arith.constant 8 : i32
    %79 = arith.muli %c3_i32, %c8_i32_27 : i32
    %80 = tpu.assume_multiple %79, 8 : i32
    %81 = arith.index_cast %80 : i32 to index
    %c0_28 = arith.constant 0 : index
    %82 = vector.load %arg9[%81, %c0_28] : memref<64x128xf32, #tpu.memory_space<vmem>>, vector<8x128xf32>
    %cst_29 = arith.constant dense<0.000000e+00> : vector<8x128xf32>
    %83 = tpu.matmul %76, %7, %cst_29 {dimension_numbers = #tpu.dot_dimension_numbers<[1], [0], [0], [1], [0, 0, 1, 1], [], []>} : vector<8x32xf32>, vector<32x128xf32>, vector<8x128xf32> -> vector<8x128xf32>
    %84 = arith.addf %82, %83 : vector<8x128xf32>
    %85 = arith.negf %84 : vector<8x128xf32>
    %86 = math.exp %85 : vector<8x128xf32>
    %cst_30 = arith.constant 1.000000e+00 : f32
    %87 = vector.broadcast %cst_30 : f32 to vector<8x128xf32>
    %88 = arith.addf %87, %86 : vector<8x128xf32>
    %89 = arith.divf %87, %88 : vector<8x128xf32>
    %90 = math.tanh %84 : vector<8x128xf32>
    %91 = vector.extract_strided_slice %89 {offsets = [0, 0], sizes = [8, 32], strides = [1, 1]} : vector<8x128xf32> to vector<8x32xf32>
    %92 = vector.extract_strided_slice %89 {offsets = [0, 32], sizes = [8, 32], strides = [1, 1]} : vector<8x128xf32> to vector<8x32xf32>
    %93 = vector.extract_strided_slice %90 {offsets = [0, 64], sizes = [8, 32], strides = [1, 1]} : vector<8x128xf32> to vector<8x32xf32>
    %94 = vector.extract_strided_slice %89 {offsets = [0, 96], sizes = [8, 32], strides = [1, 1]} : vector<8x128xf32> to vector<8x32xf32>
    %95 = arith.mulf %92, %74 : vector<8x32xf32>
    %96 = arith.mulf %91, %93 : vector<8x32xf32>
    %97 = arith.addf %95, %96 : vector<8x32xf32>
    %98 = math.tanh %97 : vector<8x32xf32>
    %99 = arith.mulf %94, %98 : vector<8x32xf32>
    %100 = arith.index_cast %80 : i32 to index
    %c0_31 = arith.constant 0 : index
    %101 = vector.load %arg9[%100, %c0_31] : memref<64x128xf32, #tpu.memory_space<vmem>>, vector<8x32xf32>
    tpu.vector_store %arg9[%100, %c0_31], %99 {strides = array<i32>} : memref<64x128xf32, #tpu.memory_space<vmem>>, vector<8x32xf32>,
    %c4_i32 = arith.constant 4 : i32
    %c8_i32_32 = arith.constant 8 : i32
    %102 = arith.muli %c4_i32, %c8_i32_32 : i32
    %103 = tpu.assume_multiple %102, 8 : i32
    %104 = arith.index_cast %103 : i32 to index
    %c0_33 = arith.constant 0 : index
    %105 = vector.load %arg9[%104, %c0_33] : memref<64x128xf32, #tpu.memory_space<vmem>>, vector<8x128xf32>
    %cst_34 = arith.constant dense<0.000000e+00> : vector<8x128xf32>
    %106 = tpu.matmul %99, %7, %cst_34 {dimension_numbers = #tpu.dot_dimension_numbers<[1], [0], [0], [1], [0, 0, 1, 1], [], []>} : vector<8x32xf32>, vector<32x128xf32>, vector<8x128xf32> -> vector<8x128xf32>
    %107 = arith.addf %105, %106 : vector<8x128xf32>
    %108 = arith.negf %107 : vector<8x128xf32>
    %109 = math.exp %108 : vector<8x128xf32>
    %cst_35 = arith.constant 1.000000e+00 : f32
    %110 = vector.broadcast %cst_35 : f32 to vector<8x128xf32>
    %111 = arith.addf %110, %109 : vector<8x128xf32>
    %112 = arith.divf %110, %111 : vector<8x128xf32>
    %113 = math.tanh %107 : vector<8x128xf32>
    %114 = vector.extract_strided_slice %112 {offsets = [0, 0], sizes = [8, 32], strides = [1, 1]} : vector<8x128xf32> to vector<8x32xf32>
    %115 = vector.extract_strided_slice %112 {offsets = [0, 32], sizes = [8, 32], strides = [1, 1]} : vector<8x128xf32> to vector<8x32xf32>
    %116 = vector.extract_strided_slice %113 {offsets = [0, 64], sizes = [8, 32], strides = [1, 1]} : vector<8x128xf32> to vector<8x32xf32>
    %117 = vector.extract_strided_slice %112 {offsets = [0, 96], sizes = [8, 32], strides = [1, 1]} : vector<8x128xf32> to vector<8x32xf32>
    %118 = arith.mulf %115, %97 : vector<8x32xf32>
    %119 = arith.mulf %114, %116 : vector<8x32xf32>
    %120 = arith.addf %118, %119 : vector<8x32xf32>
    %121 = math.tanh %120 : vector<8x32xf32>
    %122 = arith.mulf %117, %121 : vector<8x32xf32>
    %123 = arith.index_cast %103 : i32 to index
    %c0_36 = arith.constant 0 : index
    %124 = vector.load %arg9[%123, %c0_36] : memref<64x128xf32, #tpu.memory_space<vmem>>, vector<8x32xf32>
    tpu.vector_store %arg9[%123, %c0_36], %122 {strides = array<i32>} : memref<64x128xf32, #tpu.memory_space<vmem>>, vector<8x32xf32>,
    %c5_i32 = arith.constant 5 : i32
    %c8_i32_37 = arith.constant 8 : i32
    %125 = arith.muli %c5_i32, %c8_i32_37 : i32
    %126 = tpu.assume_multiple %125, 8 : i32
    %127 = arith.index_cast %126 : i32 to index
    %c0_38 = arith.constant 0 : index
    %128 = vector.load %arg9[%127, %c0_38] : memref<64x128xf32, #tpu.memory_space<vmem>>, vector<8x128xf32>
    %cst_39 = arith.constant dense<0.000000e+00> : vector<8x128xf32>
    %129 = tpu.matmul %122, %7, %cst_39 {dimension_numbers = #tpu.dot_dimension_numbers<[1], [0], [0], [1], [0, 0, 1, 1], [], []>} : vector<8x32xf32>, vector<32x128xf32>, vector<8x128xf32> -> vector<8x128xf32>
    %130 = arith.addf %128, %129 : vector<8x128xf32>
    %131 = arith.negf %130 : vector<8x128xf32>
    %132 = math.exp %131 : vector<8x128xf32>
    %cst_40 = arith.constant 1.000000e+00 : f32
    %133 = vector.broadcast %cst_40 : f32 to vector<8x128xf32>
    %134 = arith.addf %133, %132 : vector<8x128xf32>
    %135 = arith.divf %133, %134 : vector<8x128xf32>
    %136 = math.tanh %130 : vector<8x128xf32>
    %137 = vector.extract_strided_slice %135 {offsets = [0, 0], sizes = [8, 32], strides = [1, 1]} : vector<8x128xf32> to vector<8x32xf32>
    %138 = vector.extract_strided_slice %135 {offsets = [0, 32], sizes = [8, 32], strides = [1, 1]} : vector<8x128xf32> to vector<8x32xf32>
    %139 = vector.extract_strided_slice %136 {offsets = [0, 64], sizes = [8, 32], strides = [1, 1]} : vector<8x128xf32> to vector<8x32xf32>
    %140 = vector.extract_strided_slice %135 {offsets = [0, 96], sizes = [8, 32], strides = [1, 1]} : vector<8x128xf32> to vector<8x32xf32>
    %141 = arith.mulf %138, %120 : vector<8x32xf32>
    %142 = arith.mulf %137, %139 : vector<8x32xf32>
    %143 = arith.addf %141, %142 : vector<8x32xf32>
    %144 = math.tanh %143 : vector<8x32xf32>
    %145 = arith.mulf %140, %144 : vector<8x32xf32>
    %146 = arith.index_cast %126 : i32 to index
    %c0_41 = arith.constant 0 : index
    %147 = vector.load %arg9[%146, %c0_41] : memref<64x128xf32, #tpu.memory_space<vmem>>, vector<8x32xf32>
    tpu.vector_store %arg9[%146, %c0_41], %145 {strides = array<i32>} : memref<64x128xf32, #tpu.memory_space<vmem>>, vector<8x32xf32>,
    %c6_i32 = arith.constant 6 : i32
    %c8_i32_42 = arith.constant 8 : i32
    %148 = arith.muli %c6_i32, %c8_i32_42 : i32
    %149 = tpu.assume_multiple %148, 8 : i32
    %150 = arith.index_cast %149 : i32 to index
    %c0_43 = arith.constant 0 : index
    %151 = vector.load %arg9[%150, %c0_43] : memref<64x128xf32, #tpu.memory_space<vmem>>, vector<8x128xf32>
    %cst_44 = arith.constant dense<0.000000e+00> : vector<8x128xf32>
    %152 = tpu.matmul %145, %7, %cst_44 {dimension_numbers = #tpu.dot_dimension_numbers<[1], [0], [0], [1], [0, 0, 1, 1], [], []>} : vector<8x32xf32>, vector<32x128xf32>, vector<8x128xf32> -> vector<8x128xf32>
    %153 = arith.addf %151, %152 : vector<8x128xf32>
    %154 = arith.negf %153 : vector<8x128xf32>
    %155 = math.exp %154 : vector<8x128xf32>
    %cst_45 = arith.constant 1.000000e+00 : f32
    %156 = vector.broadcast %cst_45 : f32 to vector<8x128xf32>
    %157 = arith.addf %156, %155 : vector<8x128xf32>
    %158 = arith.divf %156, %157 : vector<8x128xf32>
    %159 = math.tanh %153 : vector<8x128xf32>
    %160 = vector.extract_strided_slice %158 {offsets = [0, 0], sizes = [8, 32], strides = [1, 1]} : vector<8x128xf32> to vector<8x32xf32>
    %161 = vector.extract_strided_slice %158 {offsets = [0, 32], sizes = [8, 32], strides = [1, 1]} : vector<8x128xf32> to vector<8x32xf32>
    %162 = vector.extract_strided_slice %159 {offsets = [0, 64], sizes = [8, 32], strides = [1, 1]} : vector<8x128xf32> to vector<8x32xf32>
    %163 = vector.extract_strided_slice %158 {offsets = [0, 96], sizes = [8, 32], strides = [1, 1]} : vector<8x128xf32> to vector<8x32xf32>
    %164 = arith.mulf %161, %143 : vector<8x32xf32>
    %165 = arith.mulf %160, %162 : vector<8x32xf32>
    %166 = arith.addf %164, %165 : vector<8x32xf32>
    %167 = math.tanh %166 : vector<8x32xf32>
    %168 = arith.mulf %163, %167 : vector<8x32xf32>
    %169 = arith.index_cast %149 : i32 to index
    %c0_46 = arith.constant 0 : index
    %170 = vector.load %arg9[%169, %c0_46] : memref<64x128xf32, #tpu.memory_space<vmem>>, vector<8x32xf32>
    tpu.vector_store %arg9[%169, %c0_46], %168 {strides = array<i32>} : memref<64x128xf32, #tpu.memory_space<vmem>>, vector<8x32xf32>,
    %c7_i32 = arith.constant 7 : i32
    %c8_i32_47 = arith.constant 8 : i32
    %171 = arith.muli %c7_i32, %c8_i32_47 : i32
    %172 = tpu.assume_multiple %171, 8 : i32
    %173 = arith.index_cast %172 : i32 to index
    %c0_48 = arith.constant 0 : index
    %174 = vector.load %arg9[%173, %c0_48] : memref<64x128xf32, #tpu.memory_space<vmem>>, vector<8x128xf32>
    %cst_49 = arith.constant dense<0.000000e+00> : vector<8x128xf32>
    %175 = tpu.matmul %168, %7, %cst_49 {dimension_numbers = #tpu.dot_dimension_numbers<[1], [0], [0], [1], [0, 0, 1, 1], [], []>} : vector<8x32xf32>, vector<32x128xf32>, vector<8x128xf32> -> vector<8x128xf32>
    %176 = arith.addf %174, %175 : vector<8x128xf32>
    %177 = arith.negf %176 : vector<8x128xf32>
    %178 = math.exp %177 : vector<8x128xf32>
    %cst_50 = arith.constant 1.000000e+00 : f32
    %179 = vector.broadcast %cst_50 : f32 to vector<8x128xf32>
    %180 = arith.addf %179, %178 : vector<8x128xf32>
    %181 = arith.divf %179, %180 : vector<8x128xf32>
    %182 = math.tanh %176 : vector<8x128xf32>
    %183 = vector.extract_strided_slice %181 {offsets = [0, 0], sizes = [8, 32], strides = [1, 1]} : vector<8x128xf32> to vector<8x32xf32>
    %184 = vector.extract_strided_slice %181 {offsets = [0, 32], sizes = [8, 32], strides = [1, 1]} : vector<8x128xf32> to vector<8x32xf32>
    %185 = vector.extract_strided_slice %182 {offsets = [0, 64], sizes = [8, 32], strides = [1, 1]} : vector<8x128xf32> to vector<8x32xf32>
    %186 = vector.extract_strided_slice %181 {offsets = [0, 96], sizes = [8, 32], strides = [1, 1]} : vector<8x128xf32> to vector<8x32xf32>
    %187 = arith.mulf %184, %166 : vector<8x32xf32>
    %188 = arith.mulf %183, %185 : vector<8x32xf32>
    %189 = arith.addf %187, %188 : vector<8x32xf32>
    %190 = math.tanh %189 : vector<8x32xf32>
    %191 = arith.mulf %186, %190 : vector<8x32xf32>
    %192 = arith.index_cast %172 : i32 to index
    %c0_51 = arith.constant 0 : index
    %193 = vector.load %arg9[%192, %c0_51] : memref<64x128xf32, #tpu.memory_space<vmem>>, vector<8x32xf32>
    tpu.vector_store %arg9[%192, %c0_51], %191 {strides = array<i32>} : memref<64x128xf32, #tpu.memory_space<vmem>>, vector<8x32xf32>,
    %c8_i32_52 = arith.constant 8 : i32
    %c0_53 = arith.constant 0 : index
    %c0_54 = arith.constant 0 : index
    %194 = vector.load %arg9[%c0_53, %c0_54] : memref<64x128xf32, #tpu.memory_space<vmem>>, vector<64x32xf32>
    %c0_55 = arith.constant 0 : index
    %c0_56 = arith.constant 0 : index
    %195 = vector.load %arg6[%c0_55, %c0_56] : memref<32x128xf32, #tpu.memory_space<vmem>>, vector<32x128xf32>
    %cst_57 = arith.constant dense<0.000000e+00> : vector<64x128xf32>
    %196 = tpu.matmul %194, %195, %cst_57 {dimension_numbers = #tpu.dot_dimension_numbers<[1], [0], [0], [1], [0, 0, 1, 1], [], []>} : vector<64x32xf32>, vector<32x128xf32>, vector<64x128xf32> -> vector<64x128xf32>
    %c0_58 = arith.constant 0 : index
    %c0_59 = arith.constant 0 : index
    %197 = vector.load %arg7[%c0_58, %c0_59] : memref<1x128xf32, #tpu.memory_space<vmem>>, vector<1x128xf32>
    %198 = vector.broadcast %197 : vector<1x128xf32> to vector<64x128xf32>
    %199 = arith.addf %196, %198 : vector<64x128xf32>
    %200 = arith.negf %199 : vector<64x128xf32>
    %201 = math.exp %200 : vector<64x128xf32>
    %cst_60 = arith.constant 1.000000e+00 : f32
    %202 = vector.broadcast %cst_60 : f32 to vector<64x128xf32>
    %203 = arith.addf %202, %201 : vector<64x128xf32>
    %204 = arith.divf %202, %203 : vector<64x128xf32>
    %205 = tpu.iota {dimensions = array<i32: 1>} : vector<64x128xi32>
    %c2_i32_61 = arith.constant 2 : i32
    %206 = vector.broadcast %c2_i32_61 : i32 to vector<64x128xi32>
    %207 = arith.cmpi slt, %205, %206 : vector<64x128xi32>
    %cst_62 = arith.constant 2.000000e+00 : f32
    %208 = vector.broadcast %cst_62 : f32 to vector<64x128xf32>
    %209 = arith.mulf %208, %204 : vector<64x128xf32>
    %cst_63 = arith.constant 1.000000e+00 : f32
    %210 = vector.broadcast %cst_63 : f32 to vector<64x128xf32>
    %211 = arith.subf %209, %210 : vector<64x128xf32>
    %212 = arith.select %207, %211, %204 : vector<64x128xi1>, vector<64x128xf32>
    %c0_64 = arith.constant 0 : index
    %c0_65 = arith.constant 0 : index
    %213 = vector.load %arg8[%c0_64, %c0_65] : memref<64x128xf32, #tpu.memory_space<vmem>>, vector<64x128xf32>
    tpu.vector_store %arg8[%c0_64, %c0_65], %212 {strides = array<i32>} : memref<64x128xf32, #tpu.memory_space<vmem>>, vector<64x128xf32>,
    return
  }
}

</mosaic_0001>

<llo_original>
// kernel: tpu_custom_call.1
$region0: #{tpu_custom_call.1}
  #allocation0 [shape = 'u32[]', space=smem, size = 0x4, offset = 0x4, fixed_abs, tag = 'smem constant byte address 0x4 - core index']
  #allocation1 [shape = 'u32[72,128]{1,0:T(1,128)}', space=vmem, size = 0x9000, scoped, tag = 'internal scratch']
  #allocation2 [shape = 'f32[64,128]{1,0:T(8,128)}', space=vmem, size = 0x8000, scoped, tag = 'scratch operand']
  %s0 = inlined_call_operand.vmem [shape: f32[64,4], index: 0, kind: input, shape index: {}]
  %s1 = inlined_call_operand.hbm [shape: f32[4,128], index: 1, kind: input, shape index: {}]
  %s2 = inlined_call_operand.vmem [shape: f32[32,128], index: 2, kind: input, shape index: {}]
  %s3 = inlined_call_operand.hbm [shape: f32[1,128], index: 3, kind: input, shape index: {}]
  %s4 = inlined_call_operand.hbm [shape: f32[8,32], index: 4, kind: input, shape index: {}]
  %s5 = inlined_call_operand.vmem [shape: f32[8,32], index: 5, kind: input, shape index: {}]
  %s6 = inlined_call_operand.vmem [shape: f32[32,128], index: 6, kind: input, shape index: {}]
  %s7 = inlined_call_operand.vmem [shape: f32[1,128], index: 7, kind: input, shape index: {}]
  %s8 = inlined_call_operand.hbm [shape: f32[64,128], index: 8, kind: output, shape index: {}]
  %s9 = sld [smem:[#allocation0]]
  $region54: #{tpu_custom_call.1} parent=0
    _
  %s11 = ssub.s32 1, %s9
  %s12 = scalar_select 0, %s11, %s9
  $region1: #{tpu_custom_call.1} parent=0
    #allocation3 [shape = 'u8[2048]{0}', space=vmem, size = 0x800, scoped, tag = 'input window, operand 1, single buffered']
    #allocation4 [shape = 's32[1]{0}', space=sflag, size = 0x4, scoped, tag = 'scoped memory for tpu_custom_call.1']
    #allocation5 [shape = 's32[1]{0}', space=sflag, size = 0x4, scoped, tag = 'scoped memory for tpu_custom_call.1']
    #allocation6 [shape = 'u8[512]{0}', space=vmem, size = 0x400, scoped, tag = 'input window, operand 3, single buffered']
    #allocation7 [shape = 's32[1]{0}', space=sflag, size = 0x4, scoped, tag = 'scoped memory for tpu_custom_call.1']
    #allocation8 [shape = 'u8[4096]{0}', space=vmem, size = 0x1000, scoped, tag = 'input window, operand 4, single buffered']
    #allocation9 [shape = 'u8[32768]{0}', space=vmem, size = 0x8000, scoped, tag = 'output window, operand 0, single buffered']
    %13 = vsyncpa [#allocation4], 0
    %14 = vsyncpa [#allocation7], 0
    %15 = vsyncpa [#allocation5], 0
    // Predicated region
    $region2: #{tpu_custom_call.1} parent=1 // pred_check
      _
    $region3: #{tpu_custom_call.1} parent=1 // pred_check_branch
      %17 = sbr.rel (0) target = $region5
    $region4: #{tpu_custom_call.1} parent=1 // pred_region
      _
    $region5: #{tpu_custom_call.1} parent=1 // pred_fallthru
      _
    // Predicated region
    $region6: #{tpu_custom_call.1} parent=1 // pred_check
      _
    $region7: #{tpu_custom_call.1} parent=1 // pred_check_branch
      %19 = sbr.rel (0) target = $region9
    $region8: #{tpu_custom_call.1} parent=1 // pred_region
      %21 = vsyncadd [#allocation4], 0
      %s23 = sshll.u32 %s1, 4
      %s24 = int_to_ptr.hbm [resolvable:$true] %s23
      %s25 = sshll.u32 [#allocation3], 4
      %s26 = int_to_ptr.vmem [resolvable:$true] %s25
      %28 = dma.hbm_to_vmem [thread:$0]  %s24, 64, %s26, [#allocation4]
    $region9: #{tpu_custom_call.1} parent=1 // pred_fallthru
      _
    // Predicated region
    $region10: #{tpu_custom_call.1} parent=1 // pred_check
      _
    $region11: #{tpu_custom_call.1} parent=1 // pred_check_branch
      %30 = sbr.rel (0) target = $region13
    $region12: #{tpu_custom_call.1} parent=1 // pred_region
      _
    $region13: #{tpu_custom_call.1} parent=1 // pred_fallthru
      _
    // Predicated region
    $region14: #{tpu_custom_call.1} parent=1 // pred_check
      _
    $region15: #{tpu_custom_call.1} parent=1 // pred_check_branch
      %32 = sbr.rel (0) target = $region17
    $region16: #{tpu_custom_call.1} parent=1 // pred_region
      %34 = vsyncadd [#allocation7], 0
      %s36 = sshll.u32 %s3, 4
      %s37 = int_to_ptr.hbm [resolvable:$true] %s36
      %s38 = sshll.u32 [#allocation6], 4
      %s39 = int_to_ptr.vmem [resolvable:$true] %s38
      %41 = dma.hbm_to_vmem [thread:$0]  %s37, 16, %s39, [#allocation7]
    $region17: #{tpu_custom_call.1} parent=1 // pred_fallthru
      _
    // Predicated region
    $region18: #{tpu_custom_call.1} parent=1 // pred_check
      _
    $region19: #{tpu_custom_call.1} parent=1 // pred_check_branch
      %43 = sbr.rel (0) target = $region21
    $region20: #{tpu_custom_call.1} parent=1 // pred_region
      %45 = vsyncadd [#allocation7], 0
      %s47 = sshll.u32 %s4, 4
      %s48 = int_to_ptr.hbm [resolvable:$true] %s47
      %s49 = sshll.u32 [#allocation8], 4
      %s50 = int_to_ptr.vmem [resolvable:$true] %s49
      %52 = dma.hbm_to_vmem [thread:$0]  %s48, 128, %s50, [#allocation7]
    $region21: #{tpu_custom_call.1} parent=1 // pred_fallthru
      _
    // Predicated region
    $region22: #{tpu_custom_call.1} parent=1 // pred_check
      _
    $region23: #{tpu_custom_call.1} parent=1 // pred_check_branch
      %54 = sbr.rel (0) target = $region25
    $region24: #{tpu_custom_call.1} parent=1 // pred_region
      _
    $region25: #{tpu_custom_call.1} parent=1 // pred_fallthru
      _
    // Predicated region
    $region26: #{tpu_custom_call.1} parent=1 // pred_check
      _
    $region27: #{tpu_custom_call.1} parent=1 // pred_check_branch
      %56 = sbr.rel (0) target = $region29
    $region28: #{tpu_custom_call.1} parent=1 // pred_region
      _
    $region29: #{tpu_custom_call.1} parent=1 // pred_fallthru
      _
    // Predicated region
    $region30: #{tpu_custom_call.1} parent=1 // pred_check
      _
    $region31: #{tpu_custom_call.1} parent=1 // pred_check_branch
      %58 = sbr.rel (0) target = $region33
    $region32: #{tpu_custom_call.1} parent=1 // pred_region
      _
    $region33: #{tpu_custom_call.1} parent=1 // pred_fallthru
      _
    // Predicated region
    $region34: #{tpu_custom_call.1} parent=1 // pred_check
      _
    $region35: #{tpu_custom_call.1} parent=1 // pred_check_branch
      %60 = sbr.rel (0) target = $region37
    $region36: #{tpu_custom_call.1} parent=1 // pred_region
      %62 = dma.done [#allocation4], 64
    $region37: #{tpu_custom_call.1} parent=1 // pred_fallthru
      _
    // Predicated region
    $region38: #{tpu_custom_call.1} parent=1 // pred_check
      _
    $region39: #{tpu_custom_call.1} parent=1 // pred_check_branch
      %64 = sbr.rel (0) target = $region41
    $region40: #{tpu_custom_call.1} parent=1 // pred_region
      %66 = dma.done [#allocation7], 16
    $region41: #{tpu_custom_call.1} parent=1 // pred_fallthru
      _
    // Predicated region
    $region42: #{tpu_custom_call.1} parent=1 // pred_check
      _
    $region43: #{tpu_custom_call.1} parent=1 // pred_check_branch
      %68 = sbr.rel (0) target = $region45
    $region44: #{tpu_custom_call.1} parent=1 // pred_region
      %70 = dma.done [#allocation7], 128
    $region45: #{tpu_custom_call.1} parent=1 // pred_fallthru
      _
    %v71 = vld [vmem:[%s0] sm:$0xff]
    %v72 = vld [vmem:[%s0 + $0x8] sm:$0xff]
    %v73 = vld [vmem:[%s0 + $0x10] sm:$0xff]
    %v74 = vld [vmem:[%s0 + $0x18] sm:$0xff]
    %v75 = vld [vmem:[%s0 + $0x20] sm:$0xff]
    %v76 = vld [vmem:[%s0 + $0x28] sm:$0xff]
    %v77 = vld [vmem:[%s0 + $0x30] sm:$0xff]
    %v78 = vld [vmem:[%s0 + $0x38] sm:$0xff]
    %v79 = vld [vmem:[#allocation3] sm:$0xf]
    %v80 = vld [vmem:[#allocation6] sm:$0x1]
    %v82 = vperm.slane %v80, 0
    %vm84 = vcmask 31744
    %v86 = vsel %vm84, %v71, 0
    %v89 = vsel %vm84, %v72, 0
    %v92 = vsel %vm84, %v73, 0
    %v95 = vsel %vm84, %v74, 0
    %v98 = vsel %vm84, %v75, 0
    %v101 = vsel %vm84, %v76, 0
    %v104 = vsel %vm84, %v77, 0
    %v107 = vsel %vm84, %v78, 0
    %vm109 = vcmask 1043456
    %v111 = vsel %vm109, %v79, 0
    %113 = vmatpush.msra.mxu0 0.0
    %114 = vmatpush.msra.mxu0 0.0
    %115 = vmatpush.msra.mxu0 0.0
    %116 = vmatpush.msra.mxu0 0.0
    %117 = vmatpush.msra.mxu0 0.0
    %118 = vmatpush.msra.mxu0 0.0
    %119 = vmatpush.msra.mxu0 0.0
    %120 = vmatpush.msra.mxu0 0.0
    %121 = vmatpush.msra.mxu0 0.0
    %122 = vmatpush.msra.mxu0 0.0
    %123 = vmatpush.msra.mxu0 0.0
    %124 = vmatpush.msra.mxu0 0.0
    %125 = vmatpush.msra.mxu0 0.0
    %126 = vmatpush.msra.mxu0 0.0
    %127 = vmatpush.msra.mxu0 0.0
    %128 = vmatpush.msra.mxu0 %v111
    %129 = vmatmul.f32.gmra.mxu0 %v86
    %v130 = vpop.f32.mrf.mxu0
    %v131 = vadd.f32 %v82, %v130
    %132 = vmatmul.f32.gmra.mxu0 %v89
    %v133 = vpop.f32.mrf.mxu0
    %v134 = vadd.f32 %v82, %v133
    %135 = vmatmul.f32.gmra.mxu0 %v92
    %v136 = vpop.f32.mrf.mxu0
    %v137 = vadd.f32 %v82, %v136
    %138 = vmatmul.f32.gmra.mxu0 %v95
    %v139 = vpop.f32.mrf.mxu0
    %v140 = vadd.f32 %v82, %v139
    %141 = vmatmul.f32.gmra.mxu0 %v98
    %v142 = vpop.f32.mrf.mxu0
    %v143 = vadd.f32 %v82, %v142
    %144 = vmatmul.f32.gmra.mxu0 %v101
    %v145 = vpop.f32.mrf.mxu0
    %v146 = vadd.f32 %v82, %v145
    %147 = vmatmul.f32.gmra.mxu0 %v104
    %v148 = vpop.f32.mrf.mxu0
    %v149 = vadd.f32 %v82, %v148
    %150 = vmatmul.f32.gmra.mxu0 %v107
    %v151 = vpop.f32.mrf.mxu0
    %v152 = vadd.f32 %v82, %v151
    %153 = vdwg.mxu0
    %154 = vst [vmem:[#allocation2] sm:$0xff] %v131
    %155 = vst [vmem:[#allocation2 + $0x8] sm:$0xff] %v134
    %156 = vst [vmem:[#allocation2 + $0x10] sm:$0xff] %v137
    %157 = vst [vmem:[#allocation2 + $0x18] sm:$0xff] %v140
    %158 = vst [vmem:[#allocation2 + $0x20] sm:$0xff] %v143
    %159 = vst [vmem:[#allocation2 + $0x28] sm:$0xff] %v146
    %160 = vst [vmem:[#allocation2 + $0x30] sm:$0xff] %v149
    %161 = vst [vmem:[#allocation2 + $0x38] sm:$0xff] %v152
    %v162 = vld [vmem:[%s2] sm:$0xff]
    %v163 = vld [vmem:[%s2 + $0x8] sm:$0xff]
    %v164 = vld [vmem:[%s2 + $0x10] sm:$0xff]
    %v165 = vld [vmem:[%s2 + $0x18] sm:$0xff]
    %v166 = vld [vmem:[#allocation8] sm:$0xff]
    %v167 = vld [vmem:[%s5] sm:$0xff]
    %v168 = vld [vmem:[#allocation2] sm:$0xff]
    %vm169 = vcmask 261120
    %v171 = vsel %vm169, %v166, 0
    %173 = vmatpush.msra.mxu0 0.0
    %174 = vmatpush.msra.mxu0 0.0
    %175 = vmatpush.msra.mxu0 0.0
    %176 = vmatpush.msra.mxu0 0.0
    %177 = vmatpush.msra.mxu0 0.0
    %178 = vmatpush.msra.mxu0 0.0
    %179 = vmatpush.msra.mxu0 0.0
    %180 = vmatpush.msra.mxu0 0.0
    %181 = vmatpush.msra.mxu0 0.0
    %182 = vmatpush.msra.mxu0 0.0
    %183 = vmatpush.msra.mxu0 0.0
    %184 = vmatpush.msra.mxu0 0.0
    %185 = vmatpush.msra.mxu0 %v165
    %186 = vmatpush.msra.mxu0 %v164
    %187 = vmatpush.msra.mxu0 %v163
    %188 = vmatpush.msra.mxu0 %v162
    %189 = vmatmul.f32.gmra.mxu0 %v171
    %v190 = vpop.f32.mrf.mxu0
    %v191 = vadd.f32 0.0, %v190
    %192 = vdwg.mxu0
    %v193 = vadd.f32 %v168, %v191
    %v194 = vxor.u32 %v193, 2147483648
    %v195 = vmul.f32 %v194, 1.442695
    %v196 = vpow.pop %v195
    %v197 = vadd.f32 %v196, 1.0
    %v198 = vrcp.pop %v197
    %v199 = vmul.f32 %v197, %v198
    %v200 = vsub.f32 1.0, %v199
    %v201 = vmul.f32 %v198, %v200
    %v202 = vadd.f32 %v198, %v201
    %vm203 = vweird.f32 %v197
    %vm204 = vweird.f32 %v198
    %vm205 = vmor %vm203, %vm204
    %v206 = vsel %vm205, %v198, %v202
    %v207 = vand.u32 2147483647, %v197
    %vm208 = vcmp.eq.f32.partialorder %v207, 8.507059e+37
    %v209 = vand.u32 %v197, 2147483648
    %v210 = vor.u32 1.1754944e-38, %v209
    %v211 = vsel %vm208, %v210, %v206
    %v212 = vmul.f32 1.0, %v211
    %v213 = vtanh.pop %v193
    %215 = vrot.lane.b32.xlu0 %v167, 32
    %v216 = vpop.permute.xlu0 %215
    %v218 = vmul.f32 %v212, %v216
    %220 = vrot.lane.b32.xlu0 %v213, 64
    %v221 = vpop.permute.xlu0 %220
    %v223 = vmul.f32 %v212, %v221
    %225 = vrot.lane.b32.xlu0 %v223, 32
    %v226 = vpop.permute.xlu0 %225
    %v228 = vadd.f32 %v218, %v226
    %v229 = vtanh.pop %v228
    %231 = vrot.lane.b32.xlu0 %v229, 64
    %v232 = vpop.permute.xlu0 %231
    %v234 = vmul.f32 %v212, %v232
    %236 = vrot.lane.b32.xlu0 %v234, 32
    %v237 = vpop.permute.xlu0 %236
    %239 = vst.msk [vmem:[#allocation2] sm:$0xff] %vm169, %v237
    %s240 = scalar_lea.vmem [#allocation2], 8
    %v241 = vld [vmem:[%s240] sm:$0xff]
    %v242 = vsel %vm169, %v237, 0
    %244 = vmatpush.msra.mxu0 0.0
    %245 = vmatpush.msra.mxu0 0.0
    %246 = vmatpush.msra.mxu0 0.0
    %247 = vmatpush.msra.mxu0 0.0
    %248 = vmatpush.msra.mxu0 0.0
    %249 = vmatpush.msra.mxu0 0.0
    %250 = vmatpush.msra.mxu0 0.0
    %251 = vmatpush.msra.mxu0 0.0
    %252 = vmatpush.msra.mxu0 0.0
    %253 = vmatpush.msra.mxu0 0.0
    %254 = vmatpush.msra.mxu0 0.0
    %255 = vmatpush.msra.mxu0 0.0
    %256 = vmatpush.msra.mxu0 %v165
    %257 = vmatpush.msra.mxu0 %v164
    %258 = vmatpush.msra.mxu0 %v163
    %259 = vmatpush.msra.mxu0 %v162
    %260 = vmatmul.f32.gmra.mxu0 %v242
    %v261 = vpop.f32.mrf.mxu0
    %v262 = vadd.f32 0.0, %v261
    %263 = vdwg.mxu0
    %v264 = vadd.f32 %v241, %v262
    %v265 = vxor.u32 %v264, 2147483648
    %v266 = vmul.f32 %v265, 1.442695
    %v267 = vpow.pop %v266
    %v268 = vadd.f32 %v267, 1.0
    %v269 = vrcp.pop %v268
    %v270 = vmul.f32 %v268, %v269
    %v271 = vsub.f32 1.0, %v270
    %v272 = vmul.f32 %v269, %v271
    %v273 = vadd.f32 %v269, %v272
    %vm274 = vweird.f32 %v268
    %vm275 = vweird.f32 %v269
    %vm276 = vmor %vm274, %vm275
    %v277 = vsel %vm276, %v269, %v273
    %v278 = vand.u32 2147483647, %v268
    %vm279 = vcmp.eq.f32.partialorder %v278, 8.507059e+37
    %v280 = vand.u32 %v268, 2147483648
    %v281 = vor.u32 1.1754944e-38, %v280
    %v282 = vsel %vm279, %v281, %v277
    %v283 = vmul.f32 1.0, %v282
    %v284 = vtanh.pop %v264
    %v285 = vmul.f32 %v283, %v228
    %287 = vrot.lane.b32.xlu0 %v284, 64
    %v288 = vpop.permute.xlu0 %287
    %v290 = vmul.f32 %v283, %v288
    %292 = vrot.lane.b32.xlu0 %v290, 32
    %v293 = vpop.permute.xlu0 %292
    %v295 = vadd.f32 %v285, %v293
    %v296 = vtanh.pop %v295
    %298 = vrot.lane.b32.xlu0 %v296, 64
    %v299 = vpop.permute.xlu0 %298
    %v301 = vmul.f32 %v283, %v299
    %303 = vrot.lane.b32.xlu0 %v301, 32
    %v304 = vpop.permute.xlu0 %303
    %306 = vst.msk [vmem:[%s240] sm:$0xff] %vm169, %v304
    %s307 = scalar_lea.vmem [#allocation2], 16
    %v308 = vld [vmem:[%s307] sm:$0xff]
    %v309 = vsel %vm169, %v304, 0
    %311 = vmatpush.msra.mxu0 0.0
    %312 = vmatpush.msra.mxu0 0.0
    %313 = vmatpush.msra.mxu0 0.0
    %314 = vmatpush.msra.mxu0 0.0
    %315 = vmatpush.msra.mxu0 0.0
    %316 = vmatpush.msra.mxu0 0.0
    %317 = vmatpush.msra.mxu0 0.0
    %318 = vmatpush.msra.mxu0 0.0
    %319 = vmatpush.msra.mxu0 0.0
    %320 = vmatpush.msra.mxu0 0.0
    %321 = vmatpush.msra.mxu0 0.0
    %322 = vmatpush.msra.mxu0 0.0
    %323 = vmatpush.msra.mxu0 %v165
    %324 = vmatpush.msra.mxu0 %v164
    %325 = vmatpush.msra.mxu0 %v163
    %326 = vmatpush.msra.mxu0 %v162
    %327 = vmatmul.f32.gmra.mxu0 %v309
    %v328 = vpop.f32.mrf.mxu0
    %v329 = vadd.f32 0.0, %v328
    %330 = vdwg.mxu0
    %v331 = vadd.f32 %v308, %v329
    %v332 = vxor.u32 %v331, 2147483648
    %v333 = vmul.f32 %v332, 1.442695
    %v334 = vpow.pop %v333
    %v335 = vadd.f32 %v334, 1.0
    %v336 = vrcp.pop %v335
    %v337 = vmul.f32 %v335, %v336
    %v338 = vsub.f32 1.0, %v337
    %v339 = vmul.f32 %v336, %v338
    %v340 = vadd.f32 %v336, %v339
    %vm341 = vweird.f32 %v335
    %vm342 = vweird.f32 %v336
    %vm343 = vmor %vm341, %vm342
    %v344 = vsel %vm343, %v336, %v340
    %v345 = vand.u32 2147483647, %v335
    %vm346 = vcmp.eq.f32.partialorder %v345, 8.507059e+37
    %v347 = vand.u32 %v335, 2147483648
    %v348 = vor.u32 1.1754944e-38, %v347
    %v349 = vsel %vm346, %v348, %v344
    %v350 = vmul.f32 1.0, %v349
    %v351 = vtanh.pop %v331
    %v352 = vmul.f32 %v350, %v295
    %354 = vrot.lane.b32.xlu0 %v351, 64
    %v355 = vpop.permute.xlu0 %354
    %v357 = vmul.f32 %v350, %v355
    %359 = vrot.lane.b32.xlu0 %v357, 32
    %v360 = vpop.permute.xlu0 %359
    %v362 = vadd.f32 %v352, %v360
    %v363 = vtanh.pop %v362
    %365 = vrot.lane.b32.xlu0 %v363, 64
    %v366 = vpop.permute.xlu0 %365
    %v368 = vmul.f32 %v350, %v366
    %370 = vrot.lane.b32.xlu0 %v368, 32
    %v371 = vpop.permute.xlu0 %370
    %373 = vst.msk [vmem:[%s307] sm:$0xff] %vm169, %v371
    %s374 = scalar_lea.vmem [#allocation2], 24
    %v375 = vld [vmem:[%s374] sm:$0xff]
    %v376 = vsel %vm169, %v371, 0
    %378 = vmatpush.msra.mxu0 0.0
    %379 = vmatpush.msra.mxu0 0.0
    %380 = vmatpush.msra.mxu0 0.0
    %381 = vmatpush.msra.mxu0 0.0
    %382 = vmatpush.msra.mxu0 0.0
    %383 = vmatpush.msra.mxu0 0.0
    %384 = vmatpush.msra.mxu0 0.0
    %385 = vmatpush.msra.mxu0 0.0
    %386 = vmatpush.msra.mxu0 0.0
    %387 = vmatpush.msra.mxu0 0.0
    %388 = vmatpush.msra.mxu0 0.0
    %389 = vmatpush.msra.mxu0 0.0
    %390 = vmatpush.msra.mxu0 %v165
    %391 = vmatpush.msra.mxu0 %v164
    %392 = vmatpush.msra.mxu0 %v163
    %393 = vmatpush.msra.mxu0 %v162
    %394 = vmatmul.f32.gmra.mxu0 %v376
    %v395 = vpop.f32.mrf.mxu0
    %v396 = vadd.f32 0.0, %v395
    %397 = vdwg.mxu0
    %v398 = vadd.f32 %v375, %v396
    %v399 = vxor.u32 %v398, 2147483648
    %v400 = vmul.f32 %v399, 1.442695
    %v401 = vpow.pop %v400
    %v402 = vadd.f32 %v401, 1.0
    %v403 = vrcp.pop %v402
    %v404 = vmul.f32 %v402, %v403
    %v405 = vsub.f32 1.0, %v404
    %v406 = vmul.f32 %v403, %v405
    %v407 = vadd.f32 %v403, %v406
    %vm408 = vweird.f32 %v402
    %vm409 = vweird.f32 %v403
    %vm410 = vmor %vm408, %vm409
    %v411 = vsel %vm410, %v403, %v407
    %v412 = vand.u32 2147483647, %v402
    %vm413 = vcmp.eq.f32.partialorder %v412, 8.507059e+37
    %v414 = vand.u32 %v402, 2147483648
    %v415 = vor.u32 1.1754944e-38, %v414
    %v416 = vsel %vm413, %v415, %v411
    %v417 = vmul.f32 1.0, %v416
    %v418 = vtanh.pop %v398
    %v419 = vmul.f32 %v417, %v362
    %421 = vrot.lane.b32.xlu0 %v418, 64
    %v422 = vpop.permute.xlu0 %421
    %v424 = vmul.f32 %v417, %v422
    %426 = vrot.lane.b32.xlu0 %v424, 32
    %v427 = vpop.permute.xlu0 %426
    %v429 = vadd.f32 %v419, %v427
    %v430 = vtanh.pop %v429
    %432 = vrot.lane.b32.xlu0 %v430, 64
    %v433 = vpop.permute.xlu0 %432
    %v435 = vmul.f32 %v417, %v433
    %437 = vrot.lane.b32.xlu0 %v435, 32
    %v438 = vpop.permute.xlu0 %437
    %440 = vst.msk [vmem:[%s374] sm:$0xff] %vm169, %v438
    %s441 = scalar_lea.vmem [#allocation2], 32
    %v442 = vld [vmem:[%s441] sm:$0xff]
    %v443 = vsel %vm169, %v438, 0
    %445 = vmatpush.msra.mxu0 0.0
    %446 = vmatpush.msra.mxu0 0.0
    %447 = vmatpush.msra.mxu0 0.0
    %448 = vmatpush.msra.mxu0 0.0
    %449 = vmatpush.msra.mxu0 0.0
    %450 = vmatpush.msra.mxu0 0.0
    %451 = vmatpush.msra.mxu0 0.0
    %452 = vmatpush.msra.mxu0 0.0
    %453 = vmatpush.msra.mxu0 0.0
    %454 = vmatpush.msra.mxu0 0.0
    %455 = vmatpush.msra.mxu0 0.0
    %456 = vmatpush.msra.mxu0 0.0
    %457 = vmatpush.msra.mxu0 %v165
    %458 = vmatpush.msra.mxu0 %v164
    %459 = vmatpush.msra.mxu0 %v163
    %460 = vmatpush.msra.mxu0 %v162
    %461 = vmatmul.f32.gmra.mxu0 %v443
    %v462 = vpop.f32.mrf.mxu0
    %v463 = vadd.f32 0.0, %v462
    %464 = vdwg.mxu0
    %v465 = vadd.f32 %v442, %v463
    %v466 = vxor.u32 %v465, 2147483648
    %v467 = vmul.f32 %v466, 1.442695
    %v468 = vpow.pop %v467
    %v469 = vadd.f32 %v468, 1.0
    %v470 = vrcp.pop %v469
    %v471 = vmul.f32 %v469, %v470
    %v472 = vsub.f32 1.0, %v471
    %v473 = vmul.f32 %v470, %v472
    %v474 = vadd.f32 %v470, %v473
    %vm475 = vweird.f32 %v469
    %vm476 = vweird.f32 %v470
    %vm477 = vmor %vm475, %vm476
    %v478 = vsel %vm477, %v470, %v474
    %v479 = vand.u32 2147483647, %v469
    %vm480 = vcmp.eq.f32.partialorder %v479, 8.507059e+37
    %v481 = vand.u32 %v469, 2147483648
    %v482 = vor.u32 1.1754944e-38, %v481
    %v483 = vsel %vm480, %v482, %v478
    %v484 = vmul.f32 1.0, %v483
    %v485 = vtanh.pop %v465
    %v486 = vmul.f32 %v484, %v429
    %488 = vrot.lane.b32.xlu0 %v485, 64
    %v489 = vpop.permute.xlu0 %488
    %v491 = vmul.f32 %v484, %v489
    %493 = vrot.lane.b32.xlu0 %v491, 32
    %v494 = vpop.permute.xlu0 %493
    %v496 = vadd.f32 %v486, %v494
    %v497 = vtanh.pop %v496
    %499 = vrot.lane.b32.xlu0 %v497, 64
    %v500 = vpop.permute.xlu0 %499
    %v502 = vmul.f32 %v484, %v500
    %504 = vrot.lane.b32.xlu0 %v502, 32
    %v505 = vpop.permute.xlu0 %504
    %507 = vst.msk [vmem:[%s441] sm:$0xff] %vm169, %v505
    %s508 = scalar_lea.vmem [#allocation2], 40
    %v509 = vld [vmem:[%s508] sm:$0xff]
    %v510 = vsel %vm169, %v505, 0
    %512 = vmatpush.msra.mxu0 0.0
    %513 = vmatpush.msra.mxu0 0.0
    %514 = vmatpush.msra.mxu0 0.0
    %515 = vmatpush.msra.mxu0 0.0
    %516 = vmatpush.msra.mxu0 0.0
    %517 = vmatpush.msra.mxu0 0.0
    %518 = vmatpush.msra.mxu0 0.0
    %519 = vmatpush.msra.mxu0 0.0
    %520 = vmatpush.msra.mxu0 0.0
    %521 = vmatpush.msra.mxu0 0.0
    %522 = vmatpush.msra.mxu0 0.0
    %523 = vmatpush.msra.mxu0 0.0
    %524 = vmatpush.msra.mxu0 %v165
    %525 = vmatpush.msra.mxu0 %v164
    %526 = vmatpush.msra.mxu0 %v163
    %527 = vmatpush.msra.mxu0 %v162
    %528 = vmatmul.f32.gmra.mxu0 %v510
    %v529 = vpop.f32.mrf.mxu0
    %v530 = vadd.f32 0.0, %v529
    %531 = vdwg.mxu0
    %v532 = vadd.f32 %v509, %v530
    %v533 = vxor.u32 %v532, 2147483648
    %v534 = vmul.f32 %v533, 1.442695
    %v535 = vpow.pop %v534
    %v536 = vadd.f32 %v535, 1.0
    %v537 = vrcp.pop %v536
    %v538 = vmul.f32 %v536, %v537
    %v539 = vsub.f32 1.0, %v538
    %v540 = vmul.f32 %v537, %v539
    %v541 = vadd.f32 %v537, %v540
    %vm542 = vweird.f32 %v536
    %vm543 = vweird.f32 %v537
    %vm544 = vmor %vm542, %vm543
    %v545 = vsel %vm544, %v537, %v541
    %v546 = vand.u32 2147483647, %v536
    %vm547 = vcmp.eq.f32.partialorder %v546, 8.507059e+37
    %v548 = vand.u32 %v536, 2147483648
    %v549 = vor.u32 1.1754944e-38, %v548
    %v550 = vsel %vm547, %v549, %v545
    %v551 = vmul.f32 1.0, %v550
    %v552 = vtanh.pop %v532
    %v553 = vmul.f32 %v551, %v496
    %555 = vrot.lane.b32.xlu0 %v552, 64
    %v556 = vpop.permute.xlu0 %555
    %v558 = vmul.f32 %v551, %v556
    %560 = vrot.lane.b32.xlu0 %v558, 32
    %v561 = vpop.permute.xlu0 %560
    %v563 = vadd.f32 %v553, %v561
    %v564 = vtanh.pop %v563
    %566 = vrot.lane.b32.xlu0 %v564, 64
    %v567 = vpop.permute.xlu0 %566
    %v569 = vmul.f32 %v551, %v567
    %571 = vrot.lane.b32.xlu0 %v569, 32
    %v572 = vpop.permute.xlu0 %571
    %574 = vst.msk [vmem:[%s508] sm:$0xff] %vm169, %v572
    %s575 = scalar_lea.vmem [#allocation2], 48
    %v576 = vld [vmem:[%s575] sm:$0xff]
    %v577 = vsel %vm169, %v572, 0
    %579 = vmatpush.msra.mxu0 0.0
    %580 = vmatpush.msra.mxu0 0.0
    %581 = vmatpush.msra.mxu0 0.0
    %582 = vmatpush.msra.mxu0 0.0
    %583 = vmatpush.msra.mxu0 0.0
    %584 = vmatpush.msra.mxu0 0.0
    %585 = vmatpush.msra.mxu0 0.0
    %586 = vmatpush.msra.mxu0 0.0
    %587 = vmatpush.msra.mxu0 0.0
    %588 = vmatpush.msra.mxu0 0.0
    %589 = vmatpush.msra.mxu0 0.0
    %590 = vmatpush.msra.mxu0 0.0
    %591 = vmatpush.msra.mxu0 %v165
    %592 = vmatpush.msra.mxu0 %v164
    %593 = vmatpush.msra.mxu0 %v163
    %594 = vmatpush.msra.mxu0 %v162
    %595 = vmatmul.f32.gmra.mxu0 %v577
    %v596 = vpop.f32.mrf.mxu0
    %v597 = vadd.f32 0.0, %v596
    %598 = vdwg.mxu0
    %v599 = vadd.f32 %v576, %v597
    %v600 = vxor.u32 %v599, 2147483648
    %v601 = vmul.f32 %v600, 1.442695
    %v602 = vpow.pop %v601
    %v603 = vadd.f32 %v602, 1.0
    %v604 = vrcp.pop %v603
    %v605 = vmul.f32 %v603, %v604
    %v606 = vsub.f32 1.0, %v605
    %v607 = vmul.f32 %v604, %v606
    %v608 = vadd.f32 %v604, %v607
    %vm609 = vweird.f32 %v603
    %vm610 = vweird.f32 %v604
    %vm611 = vmor %vm609, %vm610
    %v612 = vsel %vm611, %v604, %v608
    %v613 = vand.u32 2147483647, %v603
    %vm614 = vcmp.eq.f32.partialorder %v613, 8.507059e+37
    %v615 = vand.u32 %v603, 2147483648
    %v616 = vor.u32 1.1754944e-38, %v615
    %v617 = vsel %vm614, %v616, %v612
    %v618 = vmul.f32 1.0, %v617
    %v619 = vtanh.pop %v599
    %v620 = vmul.f32 %v618, %v563
    %622 = vrot.lane.b32.xlu0 %v619, 64
    %v623 = vpop.permute.xlu0 %622
    %v625 = vmul.f32 %v618, %v623
    %627 = vrot.lane.b32.xlu0 %v625, 32
    %v628 = vpop.permute.xlu0 %627
    %v630 = vadd.f32 %v620, %v628
    %v631 = vtanh.pop %v630
    %633 = vrot.lane.b32.xlu0 %v631, 64
    %v634 = vpop.permute.xlu0 %633
    %v636 = vmul.f32 %v618, %v634
    %638 = vrot.lane.b32.xlu0 %v636, 32
    %v639 = vpop.permute.xlu0 %638
    %641 = vst.msk [vmem:[%s575] sm:$0xff] %vm169, %v639
    %s642 = scalar_lea.vmem [#allocation2], 56
    %v643 = vld [vmem:[%s642] sm:$0xff]
    %v644 = vsel %vm169, %v639, 0
    %646 = vmatpush.msra.mxu0 0.0
    %647 = vmatpush.msra.mxu0 0.0
    %648 = vmatpush.msra.mxu0 0.0
    %649 = vmatpush.msra.mxu0 0.0
    %650 = vmatpush.msra.mxu0 0.0
    %651 = vmatpush.msra.mxu0 0.0
    %652 = vmatpush.msra.mxu0 0.0
    %653 = vmatpush.msra.mxu0 0.0
    %654 = vmatpush.msra.mxu0 0.0
    %655 = vmatpush.msra.mxu0 0.0
    %656 = vmatpush.msra.mxu0 0.0
    %657 = vmatpush.msra.mxu0 0.0
    %658 = vmatpush.msra.mxu0 %v165
    %659 = vmatpush.msra.mxu0 %v164
    %660 = vmatpush.msra.mxu0 %v163
    %661 = vmatpush.msra.mxu0 %v162
    %662 = vmatmul.f32.gmra.mxu0 %v644
    %v663 = vpop.f32.mrf.mxu0
    %v664 = vadd.f32 0.0, %v663
    %665 = vdwg.mxu0
    %v666 = vadd.f32 %v643, %v664
    %v667 = vxor.u32 %v666, 2147483648
    %v668 = vmul.f32 %v667, 1.442695
    %v669 = vpow.pop %v668
    %v670 = vadd.f32 %v669, 1.0
    %v671 = vrcp.pop %v670
    %v672 = vmul.f32 %v670, %v671
    %v673 = vsub.f32 1.0, %v672
    %v674 = vmul.f32 %v671, %v673
    %v675 = vadd.f32 %v671, %v674
    %vm676 = vweird.f32 %v670
    %vm677 = vweird.f32 %v671
    %vm678 = vmor %vm676, %vm677
    %v679 = vsel %vm678, %v671, %v675
    %v680 = vand.u32 2147483647, %v670
    %vm681 = vcmp.eq.f32.partialorder %v680, 8.507059e+37
    %v682 = vand.u32 %v670, 2147483648
    %v683 = vor.u32 1.1754944e-38, %v682
    %v684 = vsel %vm681, %v683, %v679
    %v685 = vmul.f32 1.0, %v684
    %v686 = vtanh.pop %v666
    %v687 = vmul.f32 %v685, %v630
    %689 = vrot.lane.b32.xlu0 %v686, 64
    %v690 = vpop.permute.xlu0 %689
    %v692 = vmul.f32 %v685, %v690
    %694 = vrot.lane.b32.xlu0 %v692, 32
    %v695 = vpop.permute.xlu0 %694
    %v697 = vadd.f32 %v687, %v695
    %v698 = vtanh.pop %v697
    %700 = vrot.lane.b32.xlu0 %v698, 64
    %v701 = vpop.permute.xlu0 %700
    %v703 = vmul.f32 %v685, %v701
    %705 = vrot.lane.b32.xlu0 %v703, 32
    %v706 = vpop.permute.xlu0 %705
    %708 = vst.msk [vmem:[%s642] sm:$0xff] %vm169, %v706
    %v709 = vld [vmem:[#allocation2] sm:$0xff]
    %v710 = vld [vmem:[#allocation2 + $0x8] sm:$0xff]
    %v711 = vld [vmem:[#allocation2 + $0x10] sm:$0xff]
    %v712 = vld [vmem:[#allocation2 + $0x18] sm:$0xff]
    %v713 = vld [vmem:[#allocation2 + $0x20] sm:$0xff]
    %v714 = vld [vmem:[#allocation2 + $0x28] sm:$0xff]
    %v715 = vld [vmem:[#allocation2 + $0x30] sm:$0xff]
    %v716 = vld [vmem:[#allocation2 + $0x38] sm:$0xff]
    %v717 = vld [vmem:[%s6] sm:$0xff]
    %v718 = vld [vmem:[%s6 + $0x8] sm:$0xff]
    %v719 = vld [vmem:[%s6 + $0x10] sm:$0xff]
    %v720 = vld [vmem:[%s6 + $0x18] sm:$0xff]
    %v721 = vld [vmem:[%s7] sm:$0x1]
    %v723 = vperm.slane %v721, 0
    %v726 = vsel %vm169, %v709, 0
    %v729 = vsel %vm169, %v710, 0
    %v732 = vsel %vm169, %v711, 0
    %v735 = vsel %vm169, %v712, 0
    %v738 = vsel %vm169, %v713, 0
    %v741 = vsel %vm169, %v714, 0
    %v744 = vsel %vm169, %v715, 0
    %v747 = vsel %vm169, %v716, 0
    %749 = vmatpush.msra.mxu0 0.0
    %750 = vmatpush.msra.mxu0 0.0
    %751 = vmatpush.msra.mxu0 0.0
    %752 = vmatpush.msra.mxu0 0.0
    %753 = vmatpush.msra.mxu0 0.0
    %754 = vmatpush.msra.mxu0 0.0
    %755 = vmatpush.msra.mxu0 0.0
    %756 = vmatpush.msra.mxu0 0.0
    %757 = vmatpush.msra.mxu0 0.0
    %758 = vmatpush.msra.mxu0 0.0
    %759 = vmatpush.msra.mxu0 0.0
    %760 = vmatpush.msra.mxu0 0.0
    %761 = vmatpush.msra.mxu0 %v720
    %762 = vmatpush.msra.mxu0 %v719
    %763 = vmatpush.msra.mxu0 %v718
    %764 = vmatpush.msra.mxu0 %v717
    %765 = vmatmul.f32.gmra.mxu0 %v726
    %v766 = vpop.f32.mrf.mxu0
    %v767 = vadd.f32 %v723, %v766
    %768 = vmatmul.f32.gmra.mxu0 %v729
    %v769 = vpop.f32.mrf.mxu0
    %v770 = vadd.f32 %v723, %v769
    %771 = vmatmul.f32.gmra.mxu0 %v732
    %v772 = vpop.f32.mrf.mxu0
    %v773 = vadd.f32 %v723, %v772
    %774 = vmatmul.f32.gmra.mxu0 %v735
    %v775 = vpop.f32.mrf.mxu0
    %v776 = vadd.f32 %v723, %v775
    %777 = vmatmul.f32.gmra.mxu0 %v738
    %v778 = vpop.f32.mrf.mxu0
    %v779 = vadd.f32 %v723, %v778
    %780 = vmatmul.f32.gmra.mxu0 %v741
    %v781 = vpop.f32.mrf.mxu0
    %v782 = vadd.f32 %v723, %v781
    %783 = vmatmul.f32.gmra.mxu0 %v744
    %v784 = vpop.f32.mrf.mxu0
    %v785 = vadd.f32 %v723, %v784
    %786 = vmatmul.f32.gmra.mxu0 %v747
    %v787 = vpop.f32.mrf.mxu0
    %v788 = vadd.f32 %v723, %v787
    %789 = vdwg.mxu0
    %v790 = vxor.u32 %v767, 2147483648
    %v791 = vxor.u32 %v770, 2147483648
    %v792 = vxor.u32 %v773, 2147483648
    %v793 = vxor.u32 %v776, 2147483648
    %v794 = vxor.u32 %v779, 2147483648
    %v795 = vxor.u32 %v782, 2147483648
    %v796 = vxor.u32 %v785, 2147483648
    %v797 = vxor.u32 %v788, 2147483648
    %v798 = vmul.f32 %v790, 1.442695
    %v799 = vpow.pop %v798
    %v800 = vmul.f32 %v791, 1.442695
    %v801 = vpow.pop %v800
    %v802 = vmul.f32 %v792, 1.442695
    %v803 = vpow.pop %v802
    %v804 = vmul.f32 %v793, 1.442695
    %v805 = vpow.pop %v804
    %v806 = vmul.f32 %v794, 1.442695
    %v807 = vpow.pop %v806
    %v808 = vmul.f32 %v795, 1.442695
    %v809 = vpow.pop %v808
    %v810 = vmul.f32 %v796, 1.442695
    %v811 = vpow.pop %v810
    %v812 = vmul.f32 %v797, 1.442695
    %v813 = vpow.pop %v812
    %v814 = vadd.f32 %v799, 1.0
    %v815 = vadd.f32 %v801, 1.0
    %v816 = vadd.f32 %v803, 1.0
    %v817 = vadd.f32 %v805, 1.0
    %v818 = vadd.f32 %v807, 1.0
    %v819 = vadd.f32 %v809, 1.0
    %v820 = vadd.f32 %v811, 1.0
    %v821 = vadd.f32 %v813, 1.0
    %v822 = vrcp.pop %v814
    %v823 = vmul.f32 %v814, %v822
    %v824 = vsub.f32 1.0, %v823
    %v825 = vmul.f32 %v822, %v824
    %v826 = vadd.f32 %v822, %v825
    %vm827 = vweird.f32 %v814
    %vm828 = vweird.f32 %v822
    %vm829 = vmor %vm827, %vm828
    %v830 = vsel %vm829, %v822, %v826
    %v831 = vand.u32 2147483647, %v814
    %vm832 = vcmp.eq.f32.partialorder %v831, 8.507059e+37
    %v833 = vand.u32 %v814, 2147483648
    %v834 = vor.u32 1.1754944e-38, %v833
    %v835 = vsel %vm832, %v834, %v830
    %v836 = vmul.f32 1.0, %v835
    %v837 = vrcp.pop %v815
    %v838 = vmul.f32 %v815, %v837
    %v839 = vsub.f32 1.0, %v838
    %v840 = vmul.f32 %v837, %v839
    %v841 = vadd.f32 %v837, %v840
    %vm842 = vweird.f32 %v815
    %vm843 = vweird.f32 %v837
    %vm844 = vmor %vm842, %vm843
    %v845 = vsel %vm844, %v837, %v841
    %v846 = vand.u32 2147483647, %v815
    %vm847 = vcmp.eq.f32.partialorder %v846, 8.507059e+37
    %v848 = vand.u32 %v815, 2147483648
    %v849 = vor.u32 1.1754944e-38, %v848
    %v850 = vsel %vm847, %v849, %v845
    %v851 = vmul.f32 1.0, %v850
    %v852 = vrcp.pop %v816
    %v853 = vmul.f32 %v816, %v852
    %v854 = vsub.f32 1.0, %v853
    %v855 = vmul.f32 %v852, %v854
    %v856 = vadd.f32 %v852, %v855
    %vm857 = vweird.f32 %v816
    %vm858 = vweird.f32 %v852
    %vm859 = vmor %vm857, %vm858
    %v860 = vsel %vm859, %v852, %v856
    %v861 = vand.u32 2147483647, %v816
    %vm862 = vcmp.eq.f32.partialorder %v861, 8.507059e+37
    %v863 = vand.u32 %v816, 2147483648
    %v864 = vor.u32 1.1754944e-38, %v863
    %v865 = vsel %vm862, %v864, %v860
    %v866 = vmul.f32 1.0, %v865
    %v867 = vrcp.pop %v817
    %v868 = vmul.f32 %v817, %v867
    %v869 = vsub.f32 1.0, %v868
    %v870 = vmul.f32 %v867, %v869
    %v871 = vadd.f32 %v867, %v870
    %vm872 = vweird.f32 %v817
    %vm873 = vweird.f32 %v867
    %vm874 = vmor %vm872, %vm873
    %v875 = vsel %vm874, %v867, %v871
    %v876 = vand.u32 2147483647, %v817
    %vm877 = vcmp.eq.f32.partialorder %v876, 8.507059e+37
    %v878 = vand.u32 %v817, 2147483648
    %v879 = vor.u32 1.1754944e-38, %v878
    %v880 = vsel %vm877, %v879, %v875
    %v881 = vmul.f32 1.0, %v880
    %v882 = vrcp.pop %v818
    %v883 = vmul.f32 %v818, %v882
    %v884 = vsub.f32 1.0, %v883
    %v885 = vmul.f32 %v882, %v884
    %v886 = vadd.f32 %v882, %v885
    %vm887 = vweird.f32 %v818
    %vm888 = vweird.f32 %v882
    %vm889 = vmor %vm887, %vm888
    %v890 = vsel %vm889, %v882, %v886
    %v891 = vand.u32 2147483647, %v818
    %vm892 = vcmp.eq.f32.partialorder %v891, 8.507059e+37
    %v893 = vand.u32 %v818, 2147483648
    %v894 = vor.u32 1.1754944e-38, %v893
    %v895 = vsel %vm892, %v894, %v890
    %v896 = vmul.f32 1.0, %v895
    %v897 = vrcp.pop %v819
    %v898 = vmul.f32 %v819, %v897
    %v899 = vsub.f32 1.0, %v898
    %v900 = vmul.f32 %v897, %v899
    %v901 = vadd.f32 %v897, %v900
    %vm902 = vweird.f32 %v819
    %vm903 = vweird.f32 %v897
    %vm904 = vmor %vm902, %vm903
    %v905 = vsel %vm904, %v897, %v901
    %v906 = vand.u32 2147483647, %v819
    %vm907 = vcmp.eq.f32.partialorder %v906, 8.507059e+37
    %v908 = vand.u32 %v819, 2147483648
    %v909 = vor.u32 1.1754944e-38, %v908
    %v910 = vsel %vm907, %v909, %v905
    %v911 = vmul.f32 1.0, %v910
    %v912 = vrcp.pop %v820
    %v913 = vmul.f32 %v820, %v912
    %v914 = vsub.f32 1.0, %v913
    %v915 = vmul.f32 %v912, %v914
    %v916 = vadd.f32 %v912, %v915
    %vm917 = vweird.f32 %v820
    %vm918 = vweird.f32 %v912
    %vm919 = vmor %vm917, %vm918
    %v920 = vsel %vm919, %v912, %v916
    %v921 = vand.u32 2147483647, %v820
    %vm922 = vcmp.eq.f32.partialorder %v921, 8.507059e+37
    %v923 = vand.u32 %v820, 2147483648
    %v924 = vor.u32 1.1754944e-38, %v923
    %v925 = vsel %vm922, %v924, %v920
    %v926 = vmul.f32 1.0, %v925
    %v927 = vrcp.pop %v821
    %v928 = vmul.f32 %v821, %v927
    %v929 = vsub.f32 1.0, %v928
    %v930 = vmul.f32 %v927, %v929
    %v931 = vadd.f32 %v927, %v930
    %vm932 = vweird.f32 %v821
    %vm933 = vweird.f32 %v927
    %vm934 = vmor %vm932, %vm933
    %v935 = vsel %vm934, %v927, %v931
    %v936 = vand.u32 2147483647, %v821
    %vm937 = vcmp.eq.f32.partialorder %v936, 8.507059e+37
    %v938 = vand.u32 %v821, 2147483648
    %v939 = vor.u32 1.1754944e-38, %v938
    %v940 = vsel %vm937, %v939, %v935
    %v941 = vmul.f32 1.0, %v940
    %v942 = vlaneseq
    %v943 = vand.u32 %v942, 127
    %vm944 = vcmp.lt.s32.totalorder %v943, 2
    %v945 = vmul.f32 %v836, 2.0
    %v946 = vmul.f32 %v851, 2.0
    %v947 = vmul.f32 %v866, 2.0
    %v948 = vmul.f32 %v881, 2.0
    %v949 = vmul.f32 %v896, 2.0
    %v950 = vmul.f32 %v911, 2.0
    %v951 = vmul.f32 %v926, 2.0
    %v952 = vmul.f32 %v941, 2.0
    %v953 = vsub.f32 %v945, 1.0
    %v954 = vsub.f32 %v946, 1.0
    %v955 = vsub.f32 %v947, 1.0
    %v956 = vsub.f32 %v948, 1.0
    %v957 = vsub.f32 %v949, 1.0
    %v958 = vsub.f32 %v950, 1.0
    %v959 = vsub.f32 %v951, 1.0
    %v960 = vsub.f32 %v952, 1.0
    %v961 = vsel %vm944, %v953, %v836
    %v962 = vsel %vm944, %v954, %v851
    %v963 = vsel %vm944, %v955, %v866
    %v964 = vsel %vm944, %v956, %v881
    %v965 = vsel %vm944, %v957, %v896
    %v966 = vsel %vm944, %v958, %v911
    %v967 = vsel %vm944, %v959, %v926
    %v968 = vsel %vm944, %v960, %v941
    %969 = vst [vmem:[#allocation9] sm:$0xff] %v961
    %970 = vst [vmem:[#allocation9 + $0x8] sm:$0xff] %v962
    %971 = vst [vmem:[#allocation9 + $0x10] sm:$0xff] %v963
    %972 = vst [vmem:[#allocation9 + $0x18] sm:$0xff] %v964
    %973 = vst [vmem:[#allocation9 + $0x20] sm:$0xff] %v965
    %974 = vst [vmem:[#allocation9 + $0x28] sm:$0xff] %v966
    %975 = vst [vmem:[#allocation9 + $0x30] sm:$0xff] %v967
    %976 = vst [vmem:[#allocation9 + $0x38] sm:$0xff] %v968
    // Predicated region
    $region46: #{tpu_custom_call.1} parent=1 // pred_check
      _
    $region47: #{tpu_custom_call.1} parent=1 // pred_check_branch
      %978 = sbr.rel (0) target = $region49
    $region48: #{tpu_custom_call.1} parent=1 // pred_region
      %980 = vsyncadd [#allocation5], 0
      %s981 = sshll.u32 [#allocation9], 4
      %s982 = int_to_ptr.vmem [resolvable:$true] %s981
      %s983 = sshll.u32 %s8, 4
      %s984 = int_to_ptr.hbm [resolvable:$true] %s983
      %989 = dma.vmem_to_hbm [thread:$0]  %s982, 1024, %s984, [#allocation5], 128, 128, 8
    $region49: #{tpu_custom_call.1} parent=1 // pred_fallthru
      _
    // Predicated region
    $region50: #{tpu_custom_call.1} parent=1 // pred_check
      _
    $region51: #{tpu_custom_call.1} parent=1 // pred_check_branch
      %991 = sbr.rel (0) target = $region53
    $region52: #{tpu_custom_call.1} parent=1 // pred_region
      %993 = dma.done [#allocation5], 1024
    $region53: #{tpu_custom_call.1} parent=1 // pred_fallthru
      _
    %994 = vsyncpa [#allocation4], 1
    %995 = vsyncpa [#allocation7], 1
    %996 = vsyncpa [#allocation5], 1

</llo_original>
